<compile_context>
chip_gen: v7x
topology: tpu7x:2x2x1
jax: 0.10.0
libtpu: 0.0.40
codegen_flags: <defaults>
</compile_context>

<pallas_src>
import functools

import jax
import jax.numpy as jnp
from jax.experimental import pallas as pl
from jax.experimental.pallas import tpu as pltpu


# Per-block byte budget for the streamed x / out tiles.  6 MiB blocks x
# (2 input + 2 output) pipeline buffers = 24 MiB, well inside the 48 MiB
# scoped-VMEM limit requested below (and under v7x's 64 MiB physical VMEM).
_BLOCK_BYTES = 6 << 20
_VMEM_LIMIT_BYTES = 48 << 20
_MIN_GRID_STEPS = 16  # >= ~8 steps per TensorCore on v7x keeps the DMA pipe full


def _leaky(y, negative_slope, scale):
    return jnp.where(y >= 0, y, y * negative_slope) * scale


def _kernel_nchw(x_ref, b_ref, o_ref, *, negative_slope, scale):
    # x_ref / o_ref block: (1, C, T); b_ref: (C, 1) resident per-channel bias.
    x = x_ref[...].astype(jnp.float32)
    b = b_ref[...].astype(jnp.float32)          # (C, 1) -> lane splat in the add
    y = x + b                                   # implicit broadcast over lanes
    o_ref[...] = _leaky(y, negative_slope, scale).astype(o_ref.dtype)


def _kernel_flat(x_ref, b_ref, o_ref, *, negative_slope, scale):
    # x_ref / o_ref block: (N, T); b_ref: (1, T) pre-expanded bias slice.
    y = x_ref[...].astype(jnp.float32) + b_ref[...].astype(jnp.float32)
    o_ref[...] = _leaky(y, negative_slope, scale).astype(o_ref.dtype)


def _choose_lane_tile(lanes, bytes_per_lane, outer_steps,
                      block_bytes=_BLOCK_BYTES, min_steps=_MIN_GRID_STEPS):
    """Largest 128-aligned tile of the lane axis that (a) divides `lanes`,
    (b) keeps one block <= block_bytes, and (c) leaves the total grid with at
    least `min_steps` steps when possible (falls back to >=4, then largest)."""
    assert lanes % 128 == 0
    cands = [t for t in range(128, lanes + 1, 128) if lanes % t == 0]
    max_t = max(128, (block_bytes // max(1, bytes_per_lane)) // 128 * 128)
    fit = [t for t in cands if t <= max_t] or [128]
    enough = [t for t in fit if outer_steps * (lanes // t) >= min_steps]
    if enough:
        return max(enough)
    some = [t for t in fit if outer_steps * (lanes // t) >= 4]
    return max(some) if some else max(fit)


def _fused_nchw(x, bias, negative_slope, scale):
    """HW >= 128: (N, C, HW) with the spatial axis tiled onto lanes."""
    N, C, H, W = x.shape
    HW = H * W
    itemsize = jnp.dtype(x.dtype).itemsize

    xf = x.reshape(N, C, HW)
    pad = (-HW) % 128
    if pad:
        # Rare: power-of-two resolutions with HW >= 128 are already aligned.
        # Padding keeps every block lane-aligned and bounded (no single huge
        # unpipelined block that could blow past scoped/physical VMEM).
        xf = jnp.pad(xf, ((0, 0), (0, 0), (0, pad)))
    HWp = HW + pad

    thw = _choose_lane_tile(HWp, C * itemsize, N)
    n_s = HWp // thw
    b2 = bias.reshape(C, 1)

    kernel = functools.partial(
        _kernel_nchw, negative_slope=negative_slope, scale=scale)
    cost = pl.CostEstimate(
        flops=3 * N * C * HWp,                      # add + slope mul/select + scale
        transcendentals=0,
        bytes_accessed=2 * N * C * HWp * itemsize + C * itemsize,
    )

    out = pl.pallas_call(
        kernel,
        out_shape=jax.ShapeDtypeStruct((N, C, HWp), x.dtype),
        grid_spec=pltpu.PrefetchScalarGridSpec(
            num_scalar_prefetch=0,
            grid=(N, n_s),
            in_specs=[
                pl.BlockSpec((1, C, thw), lambda n, s: (n, 0, s)),
                pl.BlockSpec((C, 1), lambda n, s: (0, 0)),   # resident bias
            ],
            out_specs=pl.BlockSpec((1, C, thw), lambda n, s: (n, 0, s)),
        ),
        compiler_params=pltpu.CompilerParams(
            dimension_semantics=("parallel", "parallel"),
            vmem_limit_bytes=_VMEM_LIMIT_BYTES,
        ),
        cost_estimate=cost,
    )(xf, b2)

    if pad:
        out = out[:, :, :HW]
    return out.reshape(N, C, H, W)


def _fused_small_hw(x, bias, negative_slope, scale):
    """HW < 128: flatten (C, HW) onto one lane axis so stores are unmasked.

    The reshape is a pure view for NCHW; only the tiny bias is expanded to a
    (1, C*HW) lane vector in the wrapper.
    """
    N, C, H, W = x.shape
    HW = H * W
    L = C * HW
    itemsize = jnp.dtype(x.dtype).itemsize

    xf = x.reshape(N, L)
    bflat = jnp.repeat(bias, HW).reshape(1, L)

    pad = (-L) % 128
    if pad:
        xf = jnp.pad(xf, ((0, 0), (0, pad)))
        bflat = jnp.pad(bflat, ((0, 0), (0, pad)))
    Lp = L + pad

    tl = _choose_lane_tile(Lp, N * itemsize, 1)
    n_s = Lp // tl

    kernel = functools.partial(
        _kernel_flat, negative_slope=negative_slope, scale=scale)
    cost = pl.CostEstimate(
        flops=3 * N * Lp,
        transcendentals=0,
        bytes_accessed=(2 * N + 1) * Lp * itemsize,
    )

    out = pl.pallas_call(
        kernel,
        out_shape=jax.ShapeDtypeStruct((N, Lp), x.dtype),
        grid_spec=pltpu.PrefetchScalarGridSpec(
            num_scalar_prefetch=0,
            grid=(n_s,),
            in_specs=[
                pl.BlockSpec((N, tl), lambda s: (0, s)),
                pl.BlockSpec((1, tl), lambda s: (0, s)),
            ],
            out_specs=pl.BlockSpec((N, tl), lambda s: (0, s)),
        ),
        compiler_params=pltpu.CompilerParams(
            dimension_semantics=("parallel",),
            vmem_limit_bytes=_VMEM_LIMIT_BYTES,
        ),
        cost_estimate=cost,
    )(xf, bflat)

    if pad:
        out = out[:, :L]
    return out.reshape(N, C, H, W)


def fused_leaky_relu(x, bias, negative_slope=0.2, scale=2 ** 0.5):
    """x: [N, C, H, W], bias: [C] -> leaky_relu(x + bias, 0.2) * sqrt(2)."""
    N, C, H, W = x.shape
    negative_slope = float(negative_slope)
    scale = float(scale)
    if H * W >= 128:
        return _fused_nchw(x, bias, negative_slope, scale)
    return _fused_small_hw(x, bias, negative_slope, scale)


def fused_leaky_relu_ref(x, bias, negative_slope=0.2, scale=2 ** 0.5):
    y = x + bias.reshape(1, -1, 1, 1)
    return jnp.where(y >= 0, y, y * negative_slope) * scale


if __name__ == "__main__":
    key = jax.random.PRNGKey(0)
    kx, kb, kx2, kb2 = jax.random.split(key, 4)

    # Primary shape from the module spec: N=2, C=4, 16x16.
    x = jax.random.normal(kx, (2, 4, 16, 16), dtype=jnp.float32)
    bias = 0.1 * jax.random.normal(kb, (4,), dtype=jnp.float32)
    y = jax.block_until_ready(fused_leaky_relu(x, bias))
    y_ref = fused_leaky_relu_ref(x, bias)
    assert y.shape == x.shape and y.dtype == x.dtype
    assert jnp.allclose(y, y_ref, atol=1e-5, rtol=1e-5)

    # Tiny-spatial StyleGAN2 stage exercises the lane-dense flattened path.
    x2 = jax.random.normal(kx2, (2, 256, 8, 8), dtype=jnp.float32)
    bias2 = 0.1 * jax.random.normal(kb2, (256,), dtype=jnp.float32)
    y2 = jax.block_until_ready(fused_leaky_relu(x2, bias2))
    y2_ref = fused_leaky_relu_ref(x2, bias2)
    assert y2.shape == x2.shape and y2.dtype == x2.dtype
    assert jnp.allclose(y2, y2_ref, atol=1e-5, rtol=1e-5)

    print("KERNEL_OK")
</pallas_src>

<mosaic_0001>
module attributes {stable_mosaic.version = 11 : i64} {
  func.func @_kernel_nchw(%arg0: i32, %arg1: i32, %arg2: memref<1x4x128xf32, #tpu.memory_space<vmem>>, %arg3: memref<4x1xf32, #tpu.memory_space<vmem>>, %arg4: memref<1x4x128xf32, #tpu.memory_space<vmem>>) attributes {dimension_semantics = [#tpu.dimension_semantics<parallel>, #tpu.dimension_semantics<parallel>], iteration_bounds = array<i64: 2, 2>, scalar_prefetch = 0 : i64, scratch_operands = 0 : i64, tpu.core_type = #tpu.core_type<tc>, window_params = [{transform_indices = @transform_0, window_bounds = array<i64: 1, 4, 128>}, {pipeline_mode = #tpu.pipeline_mode<synchronous>, transform_indices = @transform_1, window_bounds = array<i64: 4, 1>}, {transform_indices = @transform_2, window_bounds = array<i64: 1, 4, 128>}]} {
    %c0 = arith.constant 0 : index
    %c0_0 = arith.constant 0 : index
    %c0_1 = arith.constant 0 : index
    %0 = vector.load %arg2[%c0, %c0_0, %c0_1] : memref<1x4x128xf32, #tpu.memory_space<vmem>>, vector<1x4x128xf32>
    %c0_2 = arith.constant 0 : index
    %c0_3 = arith.constant 0 : index
    %1 = vector.load %arg3[%c0_2, %c0_3] : memref<4x1xf32, #tpu.memory_space<vmem>>, vector<4x1xf32>
    %2 = vector.shape_cast %1 : vector<4x1xf32> to vector<1x4x1xf32>
    %3 = vector.broadcast %2 : vector<1x4x1xf32> to vector<1x4x128xf32>
    %4 = arith.addf %0, %3 : vector<1x4x128xf32>
    %cst = arith.constant 0.000000e+00 : f32
    %5 = vector.broadcast %cst : f32 to vector<1x4x128xf32>
    %6 = arith.cmpf oge, %4, %5 : vector<1x4x128xf32>
    %cst_4 = arith.constant 2.000000e-01 : f32
    %7 = vector.broadcast %cst_4 : f32 to vector<1x4x128xf32>
    %8 = arith.mulf %4, %7 : vector<1x4x128xf32>
    %9 = arith.select %6, %4, %8 : vector<1x4x128xi1>, vector<1x4x128xf32>
    %cst_5 = arith.constant 1.41421354 : f32
    %10 = vector.broadcast %cst_5 : f32 to vector<1x4x128xf32>
    %11 = arith.mulf %9, %10 : vector<1x4x128xf32>
    %c0_6 = arith.constant 0 : index
    %c0_7 = arith.constant 0 : index
    %c0_8 = arith.constant 0 : index
    %12 = vector.load %arg4[%c0_6, %c0_7, %c0_8] : memref<1x4x128xf32, #tpu.memory_space<vmem>>, vector<1x4x128xf32>
    tpu.vector_store %arg4[%c0_6, %c0_7, %c0_8], %11 {strides = array<i32>} : memref<1x4x128xf32, #tpu.memory_space<vmem>>, vector<1x4x128xf32>,
    return
  }
  func.func @transform_0(%arg0: i32, %arg1: i32) -> (i32, i32, i32) {
    %c0_i32 = arith.constant 0 : i32
    %c0_i32_0 = arith.constant 0 : i32
    return %arg0, %c0_i32, %arg1 : i32, i32, i32
  }
  func.func @transform_1(%arg0: i32, %arg1: i32) -> (i32, i32) {
    %c0_i32 = arith.constant 0 : i32
    %c0_i32_0 = arith.constant 0 : i32
    %c0_i32_1 = arith.constant 0 : i32
    return %c0_i32, %c0_i32_0 : i32, i32
  }
  func.func @transform_2(%arg0: i32, %arg1: i32) -> (i32, i32, i32) {
    %c0_i32 = arith.constant 0 : i32
    %c0_i32_0 = arith.constant 0 : i32
    return %arg0, %c0_i32, %arg1 : i32, i32, i32
  }
}

</mosaic_0001>

<llo_original>
// kernel: tpu_custom_call.1
$region0: #{tpu_custom_call.1}
  #allocation0 [shape = 'u32[]', space=smem, size = 0x4, offset = 0x4, fixed_abs, tag = 'smem constant byte address 0x4 - core index']
  #allocation1 [shape = 'u32[144,128]{1,0:T(1,128)}', space=vmem, size = 0x12000, scoped, tag = 'internal scratch']
  %s0 = inlined_call_operand.hbm [shape: f32[2,4,256], index: 0, kind: input, shape index: {}]
  %s1 = inlined_call_operand.vmem [shape: f32[4,1], index: 1, kind: input, shape index: {}]
  %s2 = inlined_call_operand.hbm [shape: f32[2,4,256], index: 2, kind: output, shape index: {}]
  %s3 = sld [smem:[#allocation0]]
  $region45: #{tpu_custom_call.1} parent=0
    _
  %s5 = ssub.s32 1, %s3
  %s6 = scalar_select 0, %s5, %s3
  $region1: #{tpu_custom_call.1} parent=0
    #allocation2 [shape = 'u8[4096]{0}', space=vmem, size = 0x1000, scoped, tag = 'input window, operand 0']
    #allocation3 [shape = 's32[2]{0}', space=sflag, size = 0x8, scoped, tag = 'scoped memory for tpu_custom_call.1']
    #allocation4 [shape = 's32[2]{0}', space=sflag, size = 0x8, scoped, tag = 'scoped memory for tpu_custom_call.1']
    #allocation5 [shape = 'u8[4096]{0}', space=vmem, size = 0x1000, scoped, tag = 'output window, operand 0']
    %7 = vsyncpa [#allocation3], 0
    %s8 = scalar_lea.sflag [#allocation3], 1
    %9 = vsyncpa %s8, 0
    %10 = vsyncpa [#allocation4], 0
    %s11 = scalar_lea.sflag [#allocation4], 1
    %12 = vsyncpa %s11, 0
    loop: start=0, step=1, limit=6
    $region2: #{tpu_custom_call.1} parent=1 // loop_pre_header
      _
    $region3: #{tpu_custom_call.1} parent=1 // loop_header
      %s14 = sphi 0, %s18
      %p15 = scmp.ge.s32.totalorder %s14, 6
      %s21 = sphi 0, %s33
      %s22 = sphi 0, %s29
      %s23 = sphi 0, %s21
      %s24 = sphi 0, %s22
      %s25 = sphi 0, %s23
      %s26 = sphi 0, %s24
      %s38 = sphi 0, %s40
      %s41 = sphi 0, %s38
      %s42 = sphi 0, %s41
      %s58 = sphi 0, %s42
      %s62 = sphi 0, %s62
      %s64 = sphi 0, %s62
      %s65 = sphi 0, %s64
      %s79 = sphi 0, %s65
      %s87 = sphi 0, %s89
      %s90 = sphi 0, %s87
      %s91 = sphi 0, %s90
      %s107 = sphi 0, %s91
    $region4: #{tpu_custom_call.1} parent=1 // loop_header_branch
      %17 = sbr.rel (%p15) target = $region8
    $region5: #{tpu_custom_call.1} parent=1 // loop_body
      %s19 = ssub.s32 %s14, 1
      %s20 = ssub.s32 %s14, 2
      %s27 = sadd.s32 1, %s22
      %p28 = scmp.ge.s32.totalorder %s27, 2
      %s29 = scalar_select %p28, 0, %s27
      %s30 = sadd.s32 1, %s21
      %s31 = scalar_select %p28, %s30, %s21
      %p32 = scmp.ge.s32.totalorder %s31, 2
      %s33 = scalar_select %p32, 0, %s31
      %s34 = ssub.s32 %s21, %s33
      %s35 = ssub.s32 %s22, %s29
      %s36 = sor.u32 %s34, %s35
      %p37 = scmp.eq.s32.totalorder %s36, 0
      %s39 = sadd.s32 %s38, 1
      %s40 = scalar_select %p37, %s38, %s39
      %p43 = pneg %p37
      %p44 = scmp.eq.s32.totalorder %s14, 3
      %p45 = por %p43, %p44
      %p46 = scmp.ne.s32.totalorder %s38, %s41
      %p47 = scmp.eq.s32.totalorder %s14, 0
      %p48 = por %p46, %p47
      %p49 = scmp.ne.s32.totalorder %s38, %s41
      %p50 = scmp.eq.s32.totalorder %s19, 3
      %p51 = por %p49, %p50
      %p52 = scmp.ne.s32.totalorder %s41, %s42
      %p53 = scmp.eq.s32.totalorder %s19, 0
      %p54 = por %p52, %p53
      %p55 = scmp.ne.s32.totalorder %s41, %s42
      %p56 = scmp.eq.s32.totalorder %s20, 3
      %p57 = por %p55, %p56
      %p59 = scmp.ne.s32.totalorder %s42, %s58
      %p60 = scmp.eq.s32.totalorder %s20, 0
      %p61 = por %p59, %p60
      %s63 = sadd.s32 %s62, 1
      %p66 = scmp.eq.s32.totalorder %s14, 3
      %p67 = scmp.ne.s32.totalorder %s62, %s64
      %p68 = scmp.eq.s32.totalorder %s14, 0
      %p69 = por %p67, %p68
      %p70 = scmp.ne.s32.totalorder %s62, %s64
      %p71 = scmp.eq.s32.totalorder %s19, 3
      %p72 = por %p70, %p71
      %p73 = scmp.ne.s32.totalorder %s64, %s65
      %p74 = scmp.eq.s32.totalorder %s19, 0
      %p75 = por %p73, %p74
      %p76 = scmp.ne.s32.totalorder %s64, %s65
      %p77 = scmp.eq.s32.totalorder %s20, 3
      %p78 = por %p76, %p77
      %p80 = scmp.ne.s32.totalorder %s65, %s79
      %p81 = scmp.eq.s32.totalorder %s20, 0
      %p82 = por %p80, %p81
      %s83 = ssub.s32 %s21, %s33
      %s84 = ssub.s32 %s22, %s29
      %s85 = sor.u32 %s83, %s84
      %p86 = scmp.eq.s32.totalorder %s85, 0
      %s88 = sadd.s32 %s87, 1
      %s89 = scalar_select %p86, %s87, %s88
      %p92 = pneg %p86
      %p93 = scmp.eq.s32.totalorder %s14, 3
      %p94 = por %p92, %p93
      %p95 = scmp.ne.s32.totalorder %s87, %s90
      %p96 = scmp.eq.s32.totalorder %s14, 0
      %p97 = por %p95, %p96
      %p98 = scmp.ne.s32.totalorder %s87, %s90
      %p99 = scmp.eq.s32.totalorder %s19, 3
      %p100 = por %p98, %p99
      %p101 = scmp.ne.s32.totalorder %s90, %s91
      %p102 = scmp.eq.s32.totalorder %s19, 0
      %p103 = por %p101, %p102
      %p104 = scmp.ne.s32.totalorder %s90, %s91
      %p105 = scmp.eq.s32.totalorder %s20, 3
      %p106 = por %p104, %p105
      %p108 = scmp.ne.s32.totalorder %s91, %s107
      %p109 = scmp.eq.s32.totalorder %s20, 0
      %p110 = por %p108, %p109
      %p111 = scmp.le.s32.totalorder 1, %s14
      %p112 = scmp.lt.s32.totalorder %s14, 5
      %p113 = pnand %p111, %p112
      %p114 = pneg %p113
      // Predicated region
      $region9: #{tpu_custom_call.1} parent=5 // pred_check
        _
      $region10: #{tpu_custom_call.1} parent=5 // pred_check_branch
        %116 = sbr.rel (%p113) target = $region12
      $region11: #{tpu_custom_call.1} parent=5 // pred_region
        %s117 = ssub.s32 %s14, 1
        // Predicated region
        $region13: #{tpu_custom_call.1} parent=11 // pred_check
          %p118 = pneg %p75
        $region14: #{tpu_custom_call.1} parent=11 // pred_check_branch
          %120 = sbr.rel (%p118) target = $region16
        $region15: #{tpu_custom_call.1} parent=11 // pred_region
          _
        $region16: #{tpu_custom_call.1} parent=11 // pred_fallthru
          _
      $region12: #{tpu_custom_call.1} parent=5 // pred_fallthru
        _
      %p121 = scmp.lt.s32.totalorder %s14, 4
      // Predicated region
      $region17: #{tpu_custom_call.1} parent=5 // pred_check
        %p122 = pneg %p121
      $region18: #{tpu_custom_call.1} parent=5 // pred_check_branch
        %124 = sbr.rel (%p122) target = $region20
      $region19: #{tpu_custom_call.1} parent=5 // pred_region
        // Predicated region
        $region21: #{tpu_custom_call.1} parent=19 // pred_check
          %p125 = pneg %p48
        $region22: #{tpu_custom_call.1} parent=19 // pred_check_branch
          %127 = sbr.rel (%p125) target = $region24
        $region23: #{tpu_custom_call.1} parent=19 // pred_region
          %s128 = sand.u32 %s38, 1
          %s129 = scalar_lea.sflag [#allocation3], %s128
          %s130 = sand.u32 %s38, 1
          %s131 = smul.addr %s130, 4
          %s132 = scalar_lea.vmem [#allocation2], %s131
          %s134 = ssub.s32 64, 64
          %135 = vsyncadd %s129, %s134
          %s136 = smul.addr %s21, 2
          %s137 = sadd.s32 %s22, %s136
          %s138 = smul.addr %s137, 64
          %s139 = scalar_lea.hbm %s0, %s138
          %s141 = sshll.u32 %s132, 4
          %s142 = int_to_ptr.vmem [resolvable:$true] %s141
          %144 = dma.hbm_to_vmem [thread:$0]  %s139, 64, %s142, %s129
        $region24: #{tpu_custom_call.1} parent=19 // pred_fallthru
          _
      $region20: #{tpu_custom_call.1} parent=5 // pred_fallthru
        _
      %p145 = scmp.le.s32.totalorder 1, %s14
      %p146 = scmp.lt.s32.totalorder %s14, 5
      %p147 = pnand %p145, %p146
      %p148 = pneg %p147
      // Predicated region
      $region25: #{tpu_custom_call.1} parent=5 // pred_check
        _
      $region26: #{tpu_custom_call.1} parent=5 // pred_check_branch
        %150 = sbr.rel (%p147) target = $region28
      $region27: #{tpu_custom_call.1} parent=5 // pred_region
        %s151 = ssub.s32 %s14, 1
        %s152 = sand.u32 %s41, 1
        %s153 = scalar_lea.sflag [#allocation3], %s152
        %s154 = sand.u32 %s41, 1
        %s155 = smul.addr %s154, 4
        %s156 = scalar_lea.vmem [#allocation2], %s155
        // Predicated region
        $region29: #{tpu_custom_call.1} parent=27 // pred_check
          %p157 = pneg %p54
        $region30: #{tpu_custom_call.1} parent=27 // pred_check_branch
          %159 = sbr.rel (%p157) target = $region32
        $region31: #{tpu_custom_call.1} parent=27 // pred_region
          %160 = dma.done %s153, 64
        $region32: #{tpu_custom_call.1} parent=27 // pred_fallthru
          _
        %s161 = sand.u32 %s41, 1
        %s162 = scalar_lea.sflag [#allocation3], %s161
        %s163 = sand.u32 %s41, 1
        %s164 = smul.addr %s163, 4
        %s165 = scalar_lea.vmem [#allocation2], %s164
        %p166 = pneg %p54
        %p167 = pneg %p51
        %p168 = pneg %p75
        %p169 = pneg %p72
        %p170 = pneg %p103
        %p171 = pneg %p100
        %s172 = sand.u32 %s90, 1
        %s173 = scalar_lea.sflag [#allocation4], %s172
        %s174 = sand.u32 %s90, 1
        %s175 = smul.addr %s174, 4
        %s176 = scalar_lea.vmem [#allocation5], %s175
        %v177 = vld [vmem:[%s156] sm:$0xf]
        %v178 = vld [vmem:[%s1] sm:$0xf]
        %180 = vset.pattern.permute.xlu0 0
        %181 = vperm.xlu0 %180, %v178
        %v182 = vpop.permute.xlu0 %181
        %v184 = vadd.f32 %v177, %v182
        %vm185 = vcmp.ge.f32.partialorder %v184, 0.0
        %v186 = vmul.f32 %v184, 0.2
        %v187 = vsel %vm185, %v184, %v186
        %v188 = vmul.f32 %v187, 1.4142135
        %189 = vst [vmem:[%s176] sm:$0xf] %v188
        %s190 = sand.u32 %s90, 1
        %s191 = scalar_lea.sflag [#allocation4], %s190
        %s192 = sand.u32 %s90, 1
        %s193 = smul.addr %s192, 4
        %s194 = scalar_lea.vmem [#allocation5], %s193
        // Predicated region
        $region33: #{tpu_custom_call.1} parent=27 // pred_check
          %p195 = pneg %p100
        $region34: #{tpu_custom_call.1} parent=27 // pred_check_branch
          %197 = sbr.rel (%p195) target = $region36
        $region35: #{tpu_custom_call.1} parent=27 // pred_region
          %s199 = ssub.s32 64, 64
          %200 = vsyncadd %s191, %s199
          %s201 = smul.addr %s23, 2
          %s202 = sadd.s32 %s24, %s201
          %s203 = smul.addr %s202, 64
          %s204 = scalar_lea.hbm %s2, %s203
          %s206 = sshll.u32 %s194, 4
          %s207 = int_to_ptr.vmem [resolvable:$true] %s206
          %209 = dma.vmem_to_hbm [thread:$0]  %s207, 64, %s204, %s191
        $region36: #{tpu_custom_call.1} parent=27 // pred_fallthru
          _
      $region28: #{tpu_custom_call.1} parent=5 // pred_fallthru
        _
      %p210 = scmp.le.s32.totalorder 2, %s14
      // Predicated region
      $region37: #{tpu_custom_call.1} parent=5 // pred_check
        %p211 = pneg %p210
      $region38: #{tpu_custom_call.1} parent=5 // pred_check_branch
        %213 = sbr.rel (%p211) target = $region40
      $region39: #{tpu_custom_call.1} parent=5 // pred_region
        %s214 = ssub.s32 %s14, 2
        // Predicated region
        $region41: #{tpu_custom_call.1} parent=39 // pred_check
          %p215 = pneg %p106
        $region42: #{tpu_custom_call.1} parent=39 // pred_check_branch
          %217 = sbr.rel (%p215) target = $region44
        $region43: #{tpu_custom_call.1} parent=39 // pred_region
          %s218 = sand.u32 %s91, 1
          %s219 = scalar_lea.sflag [#allocation4], %s218
          %s220 = sand.u32 %s91, 1
          %s221 = smul.addr %s220, 4
          %s222 = scalar_lea.vmem [#allocation5], %s221
          %223 = dma.done %s219, 64
        $region44: #{tpu_custom_call.1} parent=39 // pred_fallthru
          _
      $region40: #{tpu_custom_call.1} parent=5 // pred_fallthru
        _
    $region6: #{tpu_custom_call.1} parent=1 // loop_footer
      %s18 = sadd.s32 1, %s14
    $region7: #{tpu_custom_call.1} parent=1 // loop_footer_branch
      %13 = sbr.rel target = $region3
    $region8: #{tpu_custom_call.1} parent=1 // loop_exit
      _
    %224 = vsyncpa [#allocation3], 1
    %s225 = scalar_lea.sflag [#allocation3], 1
    %226 = vsyncpa %s225, 1
    %227 = vsyncpa [#allocation4], 1
    %s228 = scalar_lea.sflag [#allocation4], 1
    %229 = vsyncpa %s228, 1

</llo_original>
